<compile_context>
chip_gen: v7x
topology: tpu7x:2x2x1
jax: 0.10.0
libtpu: 0.0.40
codegen_flags: <defaults>
</compile_context>

<pallas_src>
import functools

import jax
import jax.numpy as jnp
from jax.experimental import pallas as pl
from jax.experimental.pallas import tpu as pltpu


def _make_kernel(inv):
    """inv = 1/(1+lamb), baked in as a Python-float (weakly typed) constant."""
    def kernel(cos_ref, phi_ref, out_ref):
        cos_t = cos_ref[...]
        phi_t = phi_ref[...]
        # index = (cos_theta * 0.0).bool(): True only where cos_theta is NaN/+-Inf.
        # Do NOT fold this away -- it changes behavior for non-finite inputs.
        index = (cos_t * 0.0) != 0.0
        # masked update: cos - cos*inv + phi*inv == cos + (phi - cos)*inv
        updated = cos_t + (phi_t - cos_t) * inv
        out_ref[...] = jnp.where(index, updated, cos_t).astype(out_ref.dtype)
    return kernel


def _tpu_topology():
    """(physical VMEM bytes, has_two_tensorcores). Conservative fallbacks."""
    vmem_cap = 64 << 20          # smallest per-TC VMEM across generations (v7x)
    try:
        vmem_cap = int(pltpu.get_tpu_info().vmem_capacity_bytes)
    except Exception:
        pass
    two_tc = False
    try:
        kind = jax.devices()[0].device_kind.lower()
        two_tc = "v7" in kind    # v7x: 2 TensorCores per chip; v5e/v6e: 1
    except Exception:
        pass
    return vmem_cap, two_tc


def _pick_work_shape(B, C):
    """Purely elementwise op: reshape contiguous (B, C) to a lane-dense 2D
    shape (free under row-major layout) when C is narrow or not 128-aligned."""
    N = B * C
    if C % 128 == 0 and C >= 1024:
        return (B, C)
    for lanes in (8192, 4096, 2048, 1024, 512, 256, 128):
        if N % lanes == 0:
            return (N // lanes, lanes)
    # No lane-dense factorization; keep original shape (full-row blocks below).
    return (B, C)


def _choose_blocks(R, Cw, elem_bytes, sub_mult, target_block_bytes, split_for_two_cores):
    """Pick (block_rows, block_cols) for a mem-bound 2-in / 1-out kernel."""
    total_bytes = R * Cw * elem_bytes

    # Tiny input: one grid step over the full array -- per-step overhead dominates.
    if total_bytes <= (1 << 20):
        return R, Cw

    # Lane tile: large multiple of 128 (unmasked, lane-dense stores), or the
    # full row width when Cw is not 128-aligned (block dim must equal full dim).
    if Cw % 128 == 0:
        block_cols = min(Cw, 8192)
    else:
        block_cols = Cw

    # Row tile so one block is ~target_block_bytes; dtype-aware sublane rounding.
    rows = max(sub_mult, target_block_bytes // (block_cols * elem_bytes))
    rows = (rows // sub_mult) * sub_mult
    block_rows = R if rows >= R else int(rows)

    # Only v7x has 2 TensorCores: keep >= 2 grid steps there so the leading
    # "parallel" axes feed both cores. On v5e/v6e the grid is a serial loop.
    if split_for_two_cores:
        n_steps = pl.cdiv(R, block_rows) * pl.cdiv(Cw, block_cols)
        if n_steps < 2 and R >= 2 * sub_mult:
            half = -(-((R + 1) // 2) // sub_mult) * sub_mult
            block_rows = min(R, max(sub_mult, half))

    return block_rows, block_cols


@functools.partial(jax.jit, static_argnames=("gamma", "it", "lambda_min",
                                             "lambda_max", "donate_cos_theta"))
def angle_loss_predict(cos_theta, phi_theta, gamma=0, it=1,
                       lambda_min=5.0, lambda_max=1500.0,
                       donate_cos_theta=False):
    assert cos_theta.shape == phi_theta.shape
    assert cos_theta.ndim == 2
    B, C = cos_theta.shape
    dtype = cos_theta.dtype
    elem_bytes = jnp.dtype(dtype).itemsize

    # Hoisted scalar schedule (static Python float, matches PyTorch at it=1).
    lamb = max(lambda_min, lambda_max / (1 + 0.1 * it))
    inv = 1.0 / (1.0 + lamb)

    vmem_cap, two_tc = _tpu_topology()

    # Generation-aware block budget: 3 streams x 2 pipeline buffers x block
    # must sit comfortably inside physical VMEM (64 MiB v7x, 128 MiB v5e/v6e).
    max_block_bytes = (vmem_cap // 2) // (3 * 2)
    target_block_bytes = min(4 << 20, max_block_bytes)

    # Lane-dense work layout (free reshape for contiguous row-major arrays).
    work_shape = _pick_work_shape(B, C)
    R, Cw = work_shape
    cos_w = cos_theta.reshape(work_shape)
    phi_w = phi_theta.reshape(work_shape)

    # Sub-32-bit dtypes pack along sublanes: 8 rows (f32), 16 (bf16), 32 (int8/fp8).
    sub_mult = max(8, (8 * 4) // elem_bytes)

    block_rows, block_cols = _choose_blocks(
        R, Cw, elem_bytes, sub_mult, target_block_bytes, split_for_two_cores=two_tc)
    grid = (pl.cdiv(R, block_rows), pl.cdiv(Cw, block_cols))

    # Explicit VMEM budget: 3 streams x 2 buffers x block + slack; never exceed
    # 3/4 of physical VMEM. (v5e scoped default is only 16 MiB -> must be raised.)
    block_bytes = block_rows * block_cols * elem_bytes
    vmem_limit = int(min(vmem_cap * 3 // 4, max(32 << 20, 6 * block_bytes + (4 << 20))))

    n_elems = B * C
    cost = pl.CostEstimate(flops=5 * n_elems, transcendentals=0,
                           bytes_accessed=3 * n_elems * elem_bytes)

    extra_kwargs = {}
    if donate_cos_theta:
        # Saves one HBM allocation (peak memory), NOT bandwidth; requires the
        # caller to also donate the buffer at the jax.jit level to take effect.
        extra_kwargs["input_output_aliases"] = {0: 0}

    out = pl.pallas_call(
        _make_kernel(inv),
        out_shape=jax.ShapeDtypeStruct(work_shape, dtype),
        grid_spec=pltpu.PrefetchScalarGridSpec(
            num_scalar_prefetch=0,
            grid=grid,
            in_specs=[
                pl.BlockSpec((block_rows, block_cols), lambda i, j: (i, j)),
                pl.BlockSpec((block_rows, block_cols), lambda i, j: (i, j)),
            ],
            out_specs=pl.BlockSpec((block_rows, block_cols), lambda i, j: (i, j)),
        ),
        compiler_params=pltpu.CompilerParams(
            dimension_semantics=("parallel", "parallel"),
            vmem_limit_bytes=vmem_limit),
        cost_estimate=cost,
        **extra_kwargs,
    )(cos_w, phi_w)

    return out.reshape(B, C)


def _reference(cos_theta, phi_theta, it=1, lambda_min=5.0, lambda_max=1500.0):
    """Pure-jnp reference mirroring the PyTorch forward (incl. NaN/Inf path)."""
    lamb = max(lambda_min, lambda_max / (1 + 0.1 * it))
    index = (cos_theta * 0.0) != 0.0
    updated = cos_theta - cos_theta / (1.0 + lamb) + phi_theta / (1.0 + lamb)
    return jnp.where(index, updated, cos_theta)


if __name__ == "__main__":
    key = jax.random.PRNGKey(0)
    k1, k2 = jax.random.split(key)

    # Small, module-consistent shapes: batch=16, num_classes=128
    B, C = 16, 128
    cos_theta = jax.random.normal(k1, (B, C), dtype=jnp.float32)
    phi_theta = jax.random.normal(k2, (B, C), dtype=jnp.float32)

    # 1) Finite inputs: mask is all-False, output must equal cos_theta.
    out = jax.block_until_ready(angle_loss_predict(cos_theta, phi_theta))
    assert out.shape == (B, C) and out.dtype == cos_theta.dtype
    assert jnp.allclose(out, _reference(cos_theta, phi_theta), atol=1e-6), \
        "mismatch vs reference (finite inputs)"

    # 2) Non-finite input: the mask path is live; NaN must propagate like PyTorch.
    cos_nf = cos_theta.at[0, 0].set(jnp.inf)
    out_nf = jax.block_until_ready(angle_loss_predict(cos_nf, phi_theta))
    assert jnp.allclose(out_nf, _reference(cos_nf, phi_theta),
                        atol=1e-6, equal_nan=True), \
        "mismatch vs reference (non-finite inputs)"

    # 3) bf16 path: checks dtype-safe store and packed-sublane tiling.
    cos_bf = cos_theta.astype(jnp.bfloat16)
    phi_bf = phi_theta.astype(jnp.bfloat16)
    out_bf = jax.block_until_ready(angle_loss_predict(cos_bf, phi_bf))
    assert out_bf.dtype == jnp.bfloat16
    assert jnp.allclose(out_bf.astype(jnp.float32), cos_bf.astype(jnp.float32)), \
        "mismatch vs reference (bf16 inputs)"

    print("KERNEL_OK")
</pallas_src>

<mosaic_0001>
module attributes {stable_mosaic.version = 11 : i64} {
  func.func @kernel(%arg0: i32, %arg1: i32, %arg2: memref<1x2048xf32, #tpu.memory_space<vmem>>, %arg3: memref<1x2048xf32, #tpu.memory_space<vmem>>, %arg4: memref<1x2048xf32, #tpu.memory_space<vmem>>) attributes {dimension_semantics = [#tpu.dimension_semantics<parallel>, #tpu.dimension_semantics<parallel>], iteration_bounds = array<i64: 1, 1>, scalar_prefetch = 0 : i64, scratch_operands = 0 : i64, tpu.core_type = #tpu.core_type<tc>, window_params = [{transform_indices = @transform_0, window_bounds = array<i64: 1, 2048>}, {transform_indices = @transform_1, window_bounds = array<i64: 1, 2048>}, {transform_indices = @transform_2, window_bounds = array<i64: 1, 2048>}]} {
    %c0 = arith.constant 0 : index
    %c0_0 = arith.constant 0 : index
    %0 = vector.load %arg2[%c0, %c0_0] : memref<1x2048xf32, #tpu.memory_space<vmem>>, vector<1x2048xf32>
    %c0_1 = arith.constant 0 : index
    %c0_2 = arith.constant 0 : index
    %1 = vector.load %arg3[%c0_1, %c0_2] : memref<1x2048xf32, #tpu.memory_space<vmem>>, vector<1x2048xf32>
    %cst = arith.constant 0.000000e+00 : f32
    %2 = vector.broadcast %cst : f32 to vector<1x2048xf32>
    %3 = arith.mulf %0, %2 : vector<1x2048xf32>
    %cst_3 = arith.constant 0.000000e+00 : f32
    %4 = vector.broadcast %cst_3 : f32 to vector<1x2048xf32>
    %5 = arith.cmpf one, %3, %4 : vector<1x2048xf32>
    %6 = arith.subf %1, %0 : vector<1x2048xf32>
    %cst_4 = arith.constant 7.327960e-04 : f32
    %7 = vector.broadcast %cst_4 : f32 to vector<1x2048xf32>
    %8 = arith.mulf %6, %7 : vector<1x2048xf32>
    %9 = arith.addf %0, %8 : vector<1x2048xf32>
    %10 = arith.select %5, %9, %0 : vector<1x2048xi1>, vector<1x2048xf32>
    %c0_5 = arith.constant 0 : index
    %c0_6 = arith.constant 0 : index
    %11 = vector.load %arg4[%c0_5, %c0_6] : memref<1x2048xf32, #tpu.memory_space<vmem>>, vector<1x2048xf32>
    tpu.vector_store %arg4[%c0_5, %c0_6], %10 {strides = array<i32>} : memref<1x2048xf32, #tpu.memory_space<vmem>>, vector<1x2048xf32>,
    return
  }
  func.func @transform_0(%arg0: i32, %arg1: i32) -> (i32, i32) {
    %c0_i32 = arith.constant 0 : i32
    return %arg0, %arg1 : i32, i32
  }
  func.func @transform_1(%arg0: i32, %arg1: i32) -> (i32, i32) {
    %c0_i32 = arith.constant 0 : i32
    return %arg0, %arg1 : i32, i32
  }
  func.func @transform_2(%arg0: i32, %arg1: i32) -> (i32, i32) {
    %c0_i32 = arith.constant 0 : i32
    return %arg0, %arg1 : i32, i32
  }
}

</mosaic_0001>

<llo_original>
// kernel: angle_loss_predict.1
$region0: #{angle_loss_predict.1}
  #allocation0 [shape = 'u32[]', space=smem, size = 0x4, offset = 0x4, fixed_abs, tag = 'smem constant byte address 0x4 - core index']
  #allocation1 [shape = 'u32[144,128]{1,0:T(1,128)}', space=vmem, size = 0x12000, scoped, tag = 'internal scratch']
  %s0 = inlined_call_operand.hbm [shape: f32[1,2048], index: 0, kind: input, shape index: {}]
  %s1 = inlined_call_operand.hbm [shape: f32[1,2048], index: 1, kind: input, shape index: {}]
  %s2 = inlined_call_operand.hbm [shape: f32[1,2048], index: 2, kind: output, shape index: {}]
  %s3 = sld [smem:[#allocation0]]
  $region26: #{angle_loss_predict.1} parent=0
    _
  %s5 = ssub.s32 1, %s3
  %s6 = scalar_select 0, %s5, %s3
  $region1: #{angle_loss_predict.1} parent=0
    #allocation2 [shape = 'u8[8192]{0}', space=vmem, size = 0x2000, scoped, tag = 'input window, operand 0, single buffered']
    #allocation3 [shape = 's32[1]{0}', space=sflag, size = 0x4, scoped, tag = 'scoped memory for angle_loss_predict.1']
    #allocation4 [shape = 's32[1]{0}', space=sflag, size = 0x4, scoped, tag = 'scoped memory for angle_loss_predict.1']
    #allocation5 [shape = 'u8[8192]{0}', space=vmem, size = 0x2000, scoped, tag = 'input window, operand 1, single buffered']
    #allocation6 [shape = 's32[1]{0}', space=sflag, size = 0x4, scoped, tag = 'scoped memory for angle_loss_predict.1']
    #allocation7 [shape = 'u8[8192]{0}', space=vmem, size = 0x2000, scoped, tag = 'output window, operand 0, single buffered']
    %7 = vsyncpa [#allocation3], 0
    %8 = vsyncpa [#allocation6], 0
    %9 = vsyncpa [#allocation4], 0
    // Predicated region
    $region2: #{angle_loss_predict.1} parent=1 // pred_check
      _
    $region3: #{angle_loss_predict.1} parent=1 // pred_check_branch
      %11 = sbr.rel (0) target = $region5
    $region4: #{angle_loss_predict.1} parent=1 // pred_region
      %s13 = ssub.s32 256, 256
      %14 = vsyncadd [#allocation3], %s13
      %s16 = sshll.u32 [#allocation2], 4
      %s17 = int_to_ptr.vmem [resolvable:$true] %s16
      %19 = dma.hbm_to_vmem [thread:$0]  %s0, 256, %s17, [#allocation3]
    $region5: #{angle_loss_predict.1} parent=1 // pred_fallthru
      _
    // Predicated region
    $region6: #{angle_loss_predict.1} parent=1 // pred_check
      _
    $region7: #{angle_loss_predict.1} parent=1 // pred_check_branch
      %21 = sbr.rel (0) target = $region9
    $region8: #{angle_loss_predict.1} parent=1 // pred_region
      %s23 = ssub.s32 256, 256
      %24 = vsyncadd [#allocation6], %s23
      %s26 = sshll.u32 [#allocation5], 4
      %s27 = int_to_ptr.vmem [resolvable:$true] %s26
      %29 = dma.hbm_to_vmem [thread:$0]  %s1, 256, %s27, [#allocation6]
    $region9: #{angle_loss_predict.1} parent=1 // pred_fallthru
      _
    // Predicated region
    $region10: #{angle_loss_predict.1} parent=1 // pred_check
      _
    $region11: #{angle_loss_predict.1} parent=1 // pred_check_branch
      %31 = sbr.rel (0) target = $region13
    $region12: #{angle_loss_predict.1} parent=1 // pred_region
      %32 = dma.done [#allocation3], 256
    $region13: #{angle_loss_predict.1} parent=1 // pred_fallthru
      _
    // Predicated region
    $region14: #{angle_loss_predict.1} parent=1 // pred_check
      _
    $region15: #{angle_loss_predict.1} parent=1 // pred_check_branch
      %34 = sbr.rel (0) target = $region17
    $region16: #{angle_loss_predict.1} parent=1 // pred_region
      %35 = dma.done [#allocation6], 256
    $region17: #{angle_loss_predict.1} parent=1 // pred_fallthru
      _
    %v36 = vld [vmem:[#allocation2] sm:$0xff]
    %v37 = vld [vmem:[#allocation2 + $0x8] sm:$0xff]
    %v38 = vld [vmem:[#allocation5] sm:$0xff]
    %v39 = vld [vmem:[#allocation5 + $0x8] sm:$0xff]
    %v40 = vmul.f32 %v36, 0.0
    %v41 = vmul.f32 %v37, 0.0
    %vm42 = vcmp.ne.f32.partialorder %v40, 0.0
    %vm43 = vcmp.ne.f32.partialorder %v41, 0.0
    %v44 = vsub.f32 %v38, %v36
    %v45 = vsub.f32 %v39, %v37
    %v46 = vmul.f32 %v44, 0.000732796
    %v47 = vmul.f32 %v45, 0.000732796
    %v48 = vadd.f32 %v36, %v46
    %v49 = vadd.f32 %v37, %v47
    %v50 = vsel %vm42, %v48, %v36
    %v51 = vsel %vm43, %v49, %v37
    %52 = vst [vmem:[#allocation7] sm:$0xff] %v50
    %53 = vst [vmem:[#allocation7 + $0x8] sm:$0xff] %v51
    // Predicated region
    $region18: #{angle_loss_predict.1} parent=1 // pred_check
      _
    $region19: #{angle_loss_predict.1} parent=1 // pred_check_branch
      %55 = sbr.rel (0) target = $region21
    $region20: #{angle_loss_predict.1} parent=1 // pred_region
      %s57 = ssub.s32 256, 256
      %58 = vsyncadd [#allocation4], %s57
      %s60 = sshll.u32 [#allocation7], 4
      %s61 = int_to_ptr.vmem [resolvable:$true] %s60
      %63 = dma.vmem_to_hbm [thread:$0]  %s61, 256, %s2, [#allocation4]
    $region21: #{angle_loss_predict.1} parent=1 // pred_fallthru
      _
    // Predicated region
    $region22: #{angle_loss_predict.1} parent=1 // pred_check
      _
    $region23: #{angle_loss_predict.1} parent=1 // pred_check_branch
      %65 = sbr.rel (0) target = $region25
    $region24: #{angle_loss_predict.1} parent=1 // pred_region
      %66 = dma.done [#allocation4], 256
    $region25: #{angle_loss_predict.1} parent=1 // pred_fallthru
      _
    %67 = vsyncpa [#allocation3], 1
    %68 = vsyncpa [#allocation6], 1
    %69 = vsyncpa [#allocation4], 1

</llo_original>
